<compile_context>
chip_gen: v7x
topology: tpu7x:2x2x1
jax: 0.10.0
libtpu: 0.0.40
codegen_flags: <defaults>
</compile_context>

<pallas_src>
import functools

import jax
import jax.numpy as jnp
from jax.experimental import pallas as pl
from jax.experimental.pallas import tpu as pltpu


def _round_up(x, m):
    return -(-x // m) * m


def _unet_enc_kernel(x_ref, w1_ref, b1_ref, w2_ref, b2_ref, w3_ref, b3_ref,
                     out_ref, *, W, pad_tail):
    """Fused UNetEnc forward for one block of batch elements.

    x_ref  : (CP, L)       bf16  input, pixels (b*XWp + y*W + x) on lanes
    w1_ref : (FP, 9*CP)    bf16  im2col weights of Conv2d(Cin->F, 3x3)
    b1_ref : (FP, 1)       f32
    w2_ref : (FP, 9*FP)    bf16  im2col weights of Conv2d(F->F, 3x3)
    b2_ref : (FP, 1)       f32
    w3_ref : (OutP, FP)    bf16  4 stacked 1x1 taps of ConvTranspose2d(2, s=2)
    b3_ref : (OutP, 1)     f32
    out_ref: (OutP, L)     f32
    """
    f32, bf16 = jnp.float32, jnp.bfloat16
    offs = tuple(dy * W + dx for dy in range(3) for dx in range(3))

    def tap_stack(v):
        # v: (C, L) -> (9*C, L); row block k holds v shifted left by offs[k]
        # along the lane (pixel) axis.  Out-of-range lanes only feed garbage
        # pixel columns that the wrapper never reads.
        c, l = v.shape
        ve = jnp.concatenate([v, jnp.zeros((c, pad_tail), v.dtype)], axis=1)
        return jnp.concatenate([ve[:, off:off + l] for off in offs], axis=0)

    # ---- Conv2d(Cin -> F, 3x3, valid) + ReLU : one bf16 matmul -------------
    x = x_ref[...]                                                # (CP, L)
    a1 = jnp.dot(w1_ref[...], tap_stack(x), preferred_element_type=f32)
    a1 = jnp.maximum(a1 + b1_ref[...], 0.0).astype(bf16)         # (FP, L)

    # ---- Conv2d(F -> F, 3x3, valid) + ReLU : one bf16 matmul ---------------
    a2 = jnp.dot(w2_ref[...], tap_stack(a1), preferred_element_type=f32)
    a2 = jnp.maximum(a2 + b2_ref[...], 0.0).astype(bf16)         # (FP, L)

    # ---- ConvTranspose2d(F -> Cout, 2x2, stride 2) + ReLU ------------------
    # stride == kernel: the 4 taps are 4 independent 1x1 convs, fused into a
    # single (OutP, L) matmul and a single unmasked full-slab store.
    y = jnp.dot(w3_ref[...], a2, preferred_element_type=f32)     # (OutP, L)
    out_ref[...] = jnp.maximum(y + b3_ref[...], 0.0).astype(out_ref.dtype)


def _num_batch_blocks(n):
    """1 fat block on single-TC chips; 2-wide parallel grid on dual-TC devices."""
    if n < 2 or n % 2 != 0:
        return 1
    try:
        kind = jax.devices()[0].device_kind.lower()
    except Exception:
        return 1
    return 2 if any(tag in kind for tag in ("v7", "v5p", "v4")) else 1


def unet_enc_forward(x, w1, b1, w2, b2, w3, b3, *, batch_blocks=None):
    """x: (N, Cin, H, W); w1: (F, Cin, 3, 3); w2: (F, F, 3, 3);
    w3: (F, Cout, 2, 2) [PyTorch ConvTranspose2d layout]; biases 1-D.
    Returns (N, Cout, 2*(H-4), 2*(W-4)) == UNetEnc(...)(x)."""
    N, Cin, H, W = x.shape
    F = w1.shape[0]
    Cout = w3.shape[1]
    assert w1.shape == (F, Cin, 3, 3)
    assert w2.shape == (F, F, 3, 3)
    assert w3.shape == (F, Cout, 2, 2)
    assert H >= 5 and W >= 5, "spatial dims too small for UNetEnc"

    Ho2, Wo2 = H - 4, W - 4
    HW = H * W
    XWp = _round_up(HW, 128)            # per-batch lane width (input/act/out)
    PAD_TAIL = _round_up(2 * W + 2, 128)
    CP = _round_up(Cin, 16)             # bf16 packed sublane tile = 16 rows
    FP = _round_up(F, 16)
    OutP = _round_up(4 * Cout, 8)

    bf16, f32 = jnp.bfloat16, jnp.float32

    # ---- input: (N, Cin, H, W) -> (CP, N*XWp), pixels on lanes, bf16 -------
    xf = x.astype(bf16).reshape(N, Cin, HW)
    xf = jnp.pad(xf, ((0, 0), (0, CP - Cin), (0, XWp - HW)))
    x2d = jnp.transpose(xf, (1, 0, 2)).reshape(CP, N * XWp)

    # ---- im2col-stacked weight matrices matching the kernel's tap_stack ----
    w1m = jnp.transpose(w1, (0, 2, 3, 1))                  # (F, 3, 3, Cin)
    w1m = jnp.pad(w1m, ((0, FP - F), (0, 0), (0, 0), (0, CP - Cin)))
    w1m = w1m.reshape(FP, 9 * CP).astype(bf16)

    w2m = jnp.transpose(w2, (0, 2, 3, 1))                  # (F, 3, 3, F)
    w2m = jnp.pad(w2m, ((0, FP - F), (0, 0), (0, 0), (0, FP - F)))
    w2m = w2m.reshape(FP, 9 * FP).astype(bf16)

    w3m = jnp.transpose(w3, (2, 3, 1, 0)).reshape(4 * Cout, F)   # (ky*2+kx)*Cout+co
    w3m = jnp.pad(w3m, ((0, OutP - 4 * Cout), (0, FP - F))).astype(bf16)

    b1c = jnp.pad(b1, (0, FP - F)).reshape(FP, 1).astype(f32)
    b2c = jnp.pad(b2, (0, FP - F)).reshape(FP, 1).astype(f32)
    b3c = jnp.tile(b3.reshape(1, Cout), (4, 1)).reshape(4 * Cout)
    b3c = jnp.pad(b3c, (0, OutP - 4 * Cout)).reshape(OutP, 1).astype(f32)

    NB = batch_blocks if batch_blocks is not None else _num_batch_blocks(N)
    if N % NB != 0:
        NB = 1
    LBLK = (N // NB) * XWp

    # TODO(synk): for large H*W add a row-tiled grid with a 2-row halo and set
    # vmem_limit_bytes explicitly (v7x has only 64 MiB VMEM); at these sizes
    # the whole working set is a few tens of KiB so a flat block is fine.

    kernel = functools.partial(_unet_enc_kernel, W=W, pad_tail=PAD_TAIL)

    flops = 2 * N * XWp * (9 * CP * FP + 9 * FP * FP + FP * OutP)
    bytes_accessed = (x2d.size * 2 + w1m.size * 2 + w2m.size * 2 + w3m.size * 2
                      + (b1c.size + b2c.size + b3c.size) * 4
                      + OutP * N * XWp * 4)

    out = pl.pallas_call(
        kernel,
        out_shape=jax.ShapeDtypeStruct((OutP, N * XWp), f32),
        grid_spec=pltpu.PrefetchScalarGridSpec(
            num_scalar_prefetch=0,
            grid=(NB,),
            in_specs=[
                pl.BlockSpec((CP, LBLK), lambda i: (0, i)),
                pl.BlockSpec((FP, 9 * CP), lambda i: (0, 0)),
                pl.BlockSpec((FP, 1), lambda i: (0, 0)),
                pl.BlockSpec((FP, 9 * FP), lambda i: (0, 0)),
                pl.BlockSpec((FP, 1), lambda i: (0, 0)),
                pl.BlockSpec((OutP, FP), lambda i: (0, 0)),
                pl.BlockSpec((OutP, 1), lambda i: (0, 0)),
            ],
            out_specs=pl.BlockSpec((OutP, LBLK), lambda i: (0, i)),
        ),
        compiler_params=pltpu.CompilerParams(
            dimension_semantics=("parallel",)),
        cost_estimate=pl.CostEstimate(flops=flops, transcendentals=0,
                                      bytes_accessed=bytes_accessed),
    )(x2d, w1m, b1c, w2m, b2c, w3m, b3c)

    # (OutP, N*XWp) -> (N, Cout, 2*Ho2, 2*Wo2); drop padded rows / garbage pixels.
    t = out[:4 * Cout].reshape(2, 2, Cout, N, XWp)[..., :HW]
    t = t.reshape(2, 2, Cout, N, H, W)[..., :Ho2, :Wo2]      # (ky,kx,co,n,y2,x2)
    t = jnp.transpose(t, (3, 2, 4, 0, 5, 1))                 # (n,co,y2,ky,x2,kx)
    return t.reshape(N, Cout, 2 * Ho2, 2 * Wo2).astype(x.dtype)


def _reference(x, w1, b1, w2, b2, w3, b3):
    """Pure-JAX/XLA reference for UNetEnc.forward."""
    hi = jax.lax.Precision.HIGHEST
    dn = ("NCHW", "OIHW", "NCHW")
    a = jax.lax.conv_general_dilated(x, w1, (1, 1), "VALID",
                                     dimension_numbers=dn, precision=hi)
    a = jax.nn.relu(a + b1[None, :, None, None])
    a = jax.lax.conv_general_dilated(a, w2, (1, 1), "VALID",
                                     dimension_numbers=dn, precision=hi)
    a = jax.nn.relu(a + b2[None, :, None, None])
    # ConvTranspose2d(kernel=2, stride=2): each input pixel feeds one 2x2 block.
    t = jnp.einsum("nfyx,fokl->noyxkl", a, w3, precision=hi)
    n, co, hy, wx = t.shape[:4]
    t = jnp.transpose(t, (0, 1, 2, 4, 3, 5)).reshape(n, co, 2 * hy, 2 * wx)
    return jax.nn.relu(t + b3[None, :, None, None])


if __name__ == "__main__":
    # UNetEnc(in_channels=4, features=8, out_channels=4) on a (2, 4, 16, 16) input.
    N, Cin, Feat, Cout, H, W = 2, 4, 8, 4, 16, 16
    keys = jax.random.split(jax.random.PRNGKey(0), 7)

    # Keep test data exactly bf16-representable so the only rounding versus the
    # f32 XLA reference is the bf16 cast of the intermediate activations.
    def bq(a):
        return a.astype(jnp.bfloat16).astype(jnp.float32)

    x = bq(jax.random.normal(keys[0], (N, Cin, H, W), jnp.float32))
    w1 = bq(0.15 * jax.random.normal(keys[1], (Feat, Cin, 3, 3), jnp.float32))
    b1 = bq(0.1 * jax.random.normal(keys[2], (Feat,), jnp.float32))
    w2 = bq(0.15 * jax.random.normal(keys[3], (Feat, Feat, 3, 3), jnp.float32))
    b2 = bq(0.1 * jax.random.normal(keys[4], (Feat,), jnp.float32))
    w3 = bq(0.15 * jax.random.normal(keys[5], (Feat, Cout, 2, 2), jnp.float32))
    b3 = bq(0.1 * jax.random.normal(keys[6], (Cout,), jnp.float32))

    y = unet_enc_forward(x, w1, b1, w2, b2, w3, b3)
    y = jax.block_until_ready(y)

    y_ref = _reference(x, w1, b1, w2, b2, w3, b3)
    assert y.shape == (N, Cout, 2 * (H - 4), 2 * (W - 4)), y.shape
    # bf16 MXU operands with f32 accumulation: activation-rounding error is
    # well below this tolerance at these magnitudes.
    err = float(jnp.max(jnp.abs(y - y_ref)))
    assert err < 3e-2, f"max abs error {err}"
    print("KERNEL_OK")
</pallas_src>

<mosaic_0001>
module attributes {stable_mosaic.version = 11 : i64} {
  func.func @_unet_enc_kernel(%arg0: i32, %arg1: memref<16x512xbf16, #tpu.memory_space<vmem>>, %arg2: memref<16x144xbf16, #tpu.memory_space<vmem>>, %arg3: memref<16x1xf32, #tpu.memory_space<vmem>>, %arg4: memref<16x144xbf16, #tpu.memory_space<vmem>>, %arg5: memref<16x1xf32, #tpu.memory_space<vmem>>, %arg6: memref<16x16xbf16, #tpu.memory_space<vmem>>, %arg7: memref<16x1xf32, #tpu.memory_space<vmem>>, %arg8: memref<16x512xf32, #tpu.memory_space<vmem>>) attributes {dimension_semantics = [#tpu.dimension_semantics<parallel>], iteration_bounds = array<i64: 1>, scalar_prefetch = 0 : i64, scratch_operands = 0 : i64, tpu.core_type = #tpu.core_type<tc>, window_params = [{transform_indices = @transform_0, window_bounds = array<i64: 16, 512>}, {pipeline_mode = #tpu.pipeline_mode<synchronous>, transform_indices = @transform_1, window_bounds = array<i64: 16, 144>}, {pipeline_mode = #tpu.pipeline_mode<synchronous>, transform_indices = @transform_2, window_bounds = array<i64: 16, 1>}, {pipeline_mode = #tpu.pipeline_mode<synchronous>, transform_indices = @transform_3, window_bounds = array<i64: 16, 144>}, {pipeline_mode = #tpu.pipeline_mode<synchronous>, transform_indices = @transform_4, window_bounds = array<i64: 16, 1>}, {pipeline_mode = #tpu.pipeline_mode<synchronous>, transform_indices = @transform_5, window_bounds = array<i64: 16, 16>}, {pipeline_mode = #tpu.pipeline_mode<synchronous>, transform_indices = @transform_6, window_bounds = array<i64: 16, 1>}, {transform_indices = @transform_7, window_bounds = array<i64: 16, 512>}]} {
    %c0 = arith.constant 0 : index
    %c0_0 = arith.constant 0 : index
    %0 = vector.load %arg1[%c0, %c0_0] : memref<16x512xbf16, #tpu.memory_space<vmem>>, vector<16x512xbf16>
    %c0_1 = arith.constant 0 : index
    %c0_2 = arith.constant 0 : index
    %1 = vector.load %arg2[%c0_1, %c0_2] : memref<16x144xbf16, #tpu.memory_space<vmem>>, vector<16x144xbf16>
    %cst = arith.constant 0.000000e+00 : bf16
    %2 = vector.broadcast %cst : bf16 to vector<16x128xbf16>
    %3 = tpu.concatenate %0, %2 in 1 : vector<16x512xbf16>, vector<16x128xbf16> -> vector<16x640xbf16>
    %4 = vector.extract_strided_slice %3 {offsets = [0, 0], sizes = [16, 512], strides = [1, 1]} : vector<16x640xbf16> to vector<16x512xbf16>
    %5 = vector.extract_strided_slice %3 {offsets = [0, 1], sizes = [16, 512], strides = [1, 1]} : vector<16x640xbf16> to vector<16x512xbf16>
    %6 = vector.extract_strided_slice %3 {offsets = [0, 2], sizes = [16, 512], strides = [1, 1]} : vector<16x640xbf16> to vector<16x512xbf16>
    %7 = vector.extract_strided_slice %3 {offsets = [0, 16], sizes = [16, 512], strides = [1, 1]} : vector<16x640xbf16> to vector<16x512xbf16>
    %8 = vector.extract_strided_slice %3 {offsets = [0, 17], sizes = [16, 512], strides = [1, 1]} : vector<16x640xbf16> to vector<16x512xbf16>
    %9 = vector.extract_strided_slice %3 {offsets = [0, 18], sizes = [16, 512], strides = [1, 1]} : vector<16x640xbf16> to vector<16x512xbf16>
    %10 = vector.extract_strided_slice %3 {offsets = [0, 32], sizes = [16, 512], strides = [1, 1]} : vector<16x640xbf16> to vector<16x512xbf16>
    %11 = vector.extract_strided_slice %3 {offsets = [0, 33], sizes = [16, 512], strides = [1, 1]} : vector<16x640xbf16> to vector<16x512xbf16>
    %12 = vector.extract_strided_slice %3 {offsets = [0, 34], sizes = [16, 512], strides = [1, 1]} : vector<16x640xbf16> to vector<16x512xbf16>
    %13 = tpu.concatenate %4, %5, %6, %7, %8, %9, %10, %11, %12 in 0 : vector<16x512xbf16>, vector<16x512xbf16>, vector<16x512xbf16>, vector<16x512xbf16>, vector<16x512xbf16>, vector<16x512xbf16>, vector<16x512xbf16>, vector<16x512xbf16>, vector<16x512xbf16> -> vector<144x512xbf16>
    %cst_3 = arith.constant dense<0.000000e+00> : vector<16x512xf32>
    %14 = tpu.matmul %1, %13, %cst_3 {dimension_numbers = #tpu.dot_dimension_numbers<[1], [0], [0], [1], [0, 0, 1, 1], [], []>} : vector<16x144xbf16>, vector<144x512xbf16>, vector<16x512xf32> -> vector<16x512xf32>
    %c0_4 = arith.constant 0 : index
    %c0_5 = arith.constant 0 : index
    %15 = vector.load %arg3[%c0_4, %c0_5] : memref<16x1xf32, #tpu.memory_space<vmem>>, vector<16x1xf32>
    %16 = vector.broadcast %15 : vector<16x1xf32> to vector<16x512xf32>
    %17 = arith.addf %14, %16 : vector<16x512xf32>
    %cst_6 = arith.constant 0.000000e+00 : f32
    %18 = vector.broadcast %cst_6 : f32 to vector<16x512xf32>
    %19 = arith.maximumf %17, %18 : vector<16x512xf32>
    %20 = arith.truncf %19 : vector<16x512xf32> to vector<16x512xbf16>
    %c0_7 = arith.constant 0 : index
    %c0_8 = arith.constant 0 : index
    %21 = vector.load %arg4[%c0_7, %c0_8] : memref<16x144xbf16, #tpu.memory_space<vmem>>, vector<16x144xbf16>
    %cst_9 = arith.constant 0.000000e+00 : bf16
    %22 = vector.broadcast %cst_9 : bf16 to vector<16x128xbf16>
    %23 = tpu.concatenate %20, %22 in 1 : vector<16x512xbf16>, vector<16x128xbf16> -> vector<16x640xbf16>
    %24 = vector.extract_strided_slice %23 {offsets = [0, 0], sizes = [16, 512], strides = [1, 1]} : vector<16x640xbf16> to vector<16x512xbf16>
    %25 = vector.extract_strided_slice %23 {offsets = [0, 1], sizes = [16, 512], strides = [1, 1]} : vector<16x640xbf16> to vector<16x512xbf16>
    %26 = vector.extract_strided_slice %23 {offsets = [0, 2], sizes = [16, 512], strides = [1, 1]} : vector<16x640xbf16> to vector<16x512xbf16>
    %27 = vector.extract_strided_slice %23 {offsets = [0, 16], sizes = [16, 512], strides = [1, 1]} : vector<16x640xbf16> to vector<16x512xbf16>
    %28 = vector.extract_strided_slice %23 {offsets = [0, 17], sizes = [16, 512], strides = [1, 1]} : vector<16x640xbf16> to vector<16x512xbf16>
    %29 = vector.extract_strided_slice %23 {offsets = [0, 18], sizes = [16, 512], strides = [1, 1]} : vector<16x640xbf16> to vector<16x512xbf16>
    %30 = vector.extract_strided_slice %23 {offsets = [0, 32], sizes = [16, 512], strides = [1, 1]} : vector<16x640xbf16> to vector<16x512xbf16>
    %31 = vector.extract_strided_slice %23 {offsets = [0, 33], sizes = [16, 512], strides = [1, 1]} : vector<16x640xbf16> to vector<16x512xbf16>
    %32 = vector.extract_strided_slice %23 {offsets = [0, 34], sizes = [16, 512], strides = [1, 1]} : vector<16x640xbf16> to vector<16x512xbf16>
    %33 = tpu.concatenate %24, %25, %26, %27, %28, %29, %30, %31, %32 in 0 : vector<16x512xbf16>, vector<16x512xbf16>, vector<16x512xbf16>, vector<16x512xbf16>, vector<16x512xbf16>, vector<16x512xbf16>, vector<16x512xbf16>, vector<16x512xbf16>, vector<16x512xbf16> -> vector<144x512xbf16>
    %cst_10 = arith.constant dense<0.000000e+00> : vector<16x512xf32>
    %34 = tpu.matmul %21, %33, %cst_10 {dimension_numbers = #tpu.dot_dimension_numbers<[1], [0], [0], [1], [0, 0, 1, 1], [], []>} : vector<16x144xbf16>, vector<144x512xbf16>, vector<16x512xf32> -> vector<16x512xf32>
    %c0_11 = arith.constant 0 : index
    %c0_12 = arith.constant 0 : index
    %35 = vector.load %arg5[%c0_11, %c0_12] : memref<16x1xf32, #tpu.memory_space<vmem>>, vector<16x1xf32>
    %36 = vector.broadcast %35 : vector<16x1xf32> to vector<16x512xf32>
    %37 = arith.addf %34, %36 : vector<16x512xf32>
    %cst_13 = arith.constant 0.000000e+00 : f32
    %38 = vector.broadcast %cst_13 : f32 to vector<16x512xf32>
    %39 = arith.maximumf %37, %38 : vector<16x512xf32>
    %40 = arith.truncf %39 : vector<16x512xf32> to vector<16x512xbf16>
    %c0_14 = arith.constant 0 : index
    %c0_15 = arith.constant 0 : index
    %41 = vector.load %arg6[%c0_14, %c0_15] : memref<16x16xbf16, #tpu.memory_space<vmem>>, vector<16x16xbf16>
    %cst_16 = arith.constant dense<0.000000e+00> : vector<16x512xf32>
    %42 = tpu.matmul %41, %40, %cst_16 {dimension_numbers = #tpu.dot_dimension_numbers<[1], [0], [0], [1], [0, 0, 1, 1], [], []>} : vector<16x16xbf16>, vector<16x512xbf16>, vector<16x512xf32> -> vector<16x512xf32>
    %c0_17 = arith.constant 0 : index
    %c0_18 = arith.constant 0 : index
    %43 = vector.load %arg7[%c0_17, %c0_18] : memref<16x1xf32, #tpu.memory_space<vmem>>, vector<16x1xf32>
    %44 = vector.broadcast %43 : vector<16x1xf32> to vector<16x512xf32>
    %45 = arith.addf %42, %44 : vector<16x512xf32>
    %cst_19 = arith.constant 0.000000e+00 : f32
    %46 = vector.broadcast %cst_19 : f32 to vector<16x512xf32>
    %47 = arith.maximumf %45, %46 : vector<16x512xf32>
    %c0_20 = arith.constant 0 : index
    %c0_21 = arith.constant 0 : index
    %48 = vector.load %arg8[%c0_20, %c0_21] : memref<16x512xf32, #tpu.memory_space<vmem>>, vector<16x512xf32>
    tpu.vector_store %arg8[%c0_20, %c0_21], %47 {strides = array<i32>} : memref<16x512xf32, #tpu.memory_space<vmem>>, vector<16x512xf32>,
    return
  }
  func.func @transform_0(%arg0: i32) -> (i32, i32) {
    %c0_i32 = arith.constant 0 : i32
    %c0_i32_0 = arith.constant 0 : i32
    return %c0_i32, %arg0 : i32, i32
  }
  func.func @transform_1(%arg0: i32) -> (i32, i32) {
    %c0_i32 = arith.constant 0 : i32
    %c0_i32_0 = arith.constant 0 : i32
    %c0_i32_1 = arith.constant 0 : i32
    return %c0_i32, %c0_i32_0 : i32, i32
  }
  func.func @transform_2(%arg0: i32) -> (i32, i32) {
    %c0_i32 = arith.constant 0 : i32
    %c0_i32_0 = arith.constant 0 : i32
    %c0_i32_1 = arith.constant 0 : i32
    return %c0_i32, %c0_i32_0 : i32, i32
  }
  func.func @transform_3(%arg0: i32) -> (i32, i32) {
    %c0_i32 = arith.constant 0 : i32
    %c0_i32_0 = arith.constant 0 : i32
    %c0_i32_1 = arith.constant 0 : i32
    return %c0_i32, %c0_i32_0 : i32, i32
  }
  func.func @transform_4(%arg0: i32) -> (i32, i32) {
    %c0_i32 = arith.constant 0 : i32
    %c0_i32_0 = arith.constant 0 : i32
    %c0_i32_1 = arith.constant 0 : i32
    return %c0_i32, %c0_i32_0 : i32, i32
  }
  func.func @transform_5(%arg0: i32) -> (i32, i32) {
    %c0_i32 = arith.constant 0 : i32
    %c0_i32_0 = arith.constant 0 : i32
    %c0_i32_1 = arith.constant 0 : i32
    return %c0_i32, %c0_i32_0 : i32, i32
  }
  func.func @transform_6(%arg0: i32) -> (i32, i32) {
    %c0_i32 = arith.constant 0 : i32
    %c0_i32_0 = arith.constant 0 : i32
    %c0_i32_1 = arith.constant 0 : i32
    return %c0_i32, %c0_i32_0 : i32, i32
  }
  func.func @transform_7(%arg0: i32) -> (i32, i32) {
    %c0_i32 = arith.constant 0 : i32
    %c0_i32_0 = arith.constant 0 : i32
    return %c0_i32, %arg0 : i32, i32
  }
}

</mosaic_0001>

<llo_original>
// kernel: tpu_custom_call.1
$region0: #{tpu_custom_call.1}
  #allocation0 [shape = 'u32[]', space=smem, size = 0x4, offset = 0x4, fixed_abs, tag = 'smem constant byte address 0x4 - core index']
  #allocation1 [shape = 'u32[144,128]{1,0:T(1,128)}', space=vmem, size = 0x12000, scoped, tag = 'internal scratch']
  %s0 = inlined_call_operand.vmem [shape: bf16[16,512], index: 0, kind: input, shape index: {}]
  %s1 = inlined_call_operand.vmem [shape: bf16[16,144], index: 1, kind: input, shape index: {}]
  %s2 = inlined_call_operand.vmem [shape: f32[16,1], index: 2, kind: input, shape index: {}]
  %s3 = inlined_call_operand.hbm [shape: bf16[16,144], index: 3, kind: input, shape index: {}]
  %s4 = inlined_call_operand.vmem [shape: f32[16,1], index: 4, kind: input, shape index: {}]
  %s5 = inlined_call_operand.vmem [shape: bf16[16,16], index: 5, kind: input, shape index: {}]
  %s6 = inlined_call_operand.vmem [shape: f32[16,1], index: 6, kind: input, shape index: {}]
  %s7 = inlined_call_operand.hbm [shape: f32[16,512], index: 7, kind: output, shape index: {}]
  %s8 = sld [smem:[#allocation0]]
  $region42: #{tpu_custom_call.1} parent=0
    _
  %s10 = ssub.s32 1, %s8
  %s11 = scalar_select 0, %s10, %s8
  $region1: #{tpu_custom_call.1} parent=0
    #allocation2 [shape = 'u8[8192]{0}', space=vmem, size = 0x2000, scoped, tag = 'input window, operand 3, single buffered']
    #allocation3 [shape = 's32[1]{0}', space=sflag, size = 0x4, scoped, tag = 'scoped memory for tpu_custom_call.1']
    #allocation4 [shape = 's32[1]{0}', space=sflag, size = 0x4, scoped, tag = 'scoped memory for tpu_custom_call.1']
    #allocation5 [shape = 'u8[32768]{0}', space=vmem, size = 0x8000, scoped, tag = 'output window, operand 0, single buffered']
    %12 = vsyncpa [#allocation3], 0
    %13 = vsyncpa [#allocation4], 0
    // Predicated region
    $region2: #{tpu_custom_call.1} parent=1 // pred_check
      _
    $region3: #{tpu_custom_call.1} parent=1 // pred_check_branch
      %15 = sbr.rel (0) target = $region5
    $region4: #{tpu_custom_call.1} parent=1 // pred_region
      _
    $region5: #{tpu_custom_call.1} parent=1 // pred_fallthru
      _
    // Predicated region
    $region6: #{tpu_custom_call.1} parent=1 // pred_check
      _
    $region7: #{tpu_custom_call.1} parent=1 // pred_check_branch
      %17 = sbr.rel (0) target = $region9
    $region8: #{tpu_custom_call.1} parent=1 // pred_region
      _
    $region9: #{tpu_custom_call.1} parent=1 // pred_fallthru
      _
    // Predicated region
    $region10: #{tpu_custom_call.1} parent=1 // pred_check
      _
    $region11: #{tpu_custom_call.1} parent=1 // pred_check_branch
      %19 = sbr.rel (0) target = $region13
    $region12: #{tpu_custom_call.1} parent=1 // pred_region
      _
    $region13: #{tpu_custom_call.1} parent=1 // pred_fallthru
      _
    // Predicated region
    $region14: #{tpu_custom_call.1} parent=1 // pred_check
      _
    $region15: #{tpu_custom_call.1} parent=1 // pred_check_branch
      %21 = sbr.rel (0) target = $region17
    $region16: #{tpu_custom_call.1} parent=1 // pred_region
      %s23 = ssub.s32 256, 256
      %24 = vsyncadd [#allocation3], %s23
      %s25 = sshll.u32 [#allocation2], 4
      %s26 = int_to_ptr.vmem [resolvable:$true] %s25
      %31 = dma.hbm_to_vmem [thread:$0]  %s3, 256, %s26, [#allocation3], 128, 128, 8
    $region17: #{tpu_custom_call.1} parent=1 // pred_fallthru
      _
    // Predicated region
    $region18: #{tpu_custom_call.1} parent=1 // pred_check
      _
    $region19: #{tpu_custom_call.1} parent=1 // pred_check_branch
      %33 = sbr.rel (0) target = $region21
    $region20: #{tpu_custom_call.1} parent=1 // pred_region
      _
    $region21: #{tpu_custom_call.1} parent=1 // pred_fallthru
      _
    // Predicated region
    $region22: #{tpu_custom_call.1} parent=1 // pred_check
      _
    $region23: #{tpu_custom_call.1} parent=1 // pred_check_branch
      %35 = sbr.rel (0) target = $region25
    $region24: #{tpu_custom_call.1} parent=1 // pred_region
      _
    $region25: #{tpu_custom_call.1} parent=1 // pred_fallthru
      _
    // Predicated region
    $region26: #{tpu_custom_call.1} parent=1 // pred_check
      _
    $region27: #{tpu_custom_call.1} parent=1 // pred_check_branch
      %37 = sbr.rel (0) target = $region29
    $region28: #{tpu_custom_call.1} parent=1 // pred_region
      _
    $region29: #{tpu_custom_call.1} parent=1 // pred_fallthru
      _
    // Predicated region
    $region30: #{tpu_custom_call.1} parent=1 // pred_check
      _
    $region31: #{tpu_custom_call.1} parent=1 // pred_check_branch
      %39 = sbr.rel (0) target = $region33
    $region32: #{tpu_custom_call.1} parent=1 // pred_region
      %40 = dma.done [#allocation3], 256
    $region33: #{tpu_custom_call.1} parent=1 // pred_fallthru
      _
    %v42 = vld [vmem:[%s0] sm:$0xff]
    %v43 = vld [vmem:[%s0 + $0x8] sm:$0xff]
    %v44 = vld [vmem:[%s0 + $0x10] sm:$0xff]
    %v45 = vld [vmem:[%s0 + $0x18] sm:$0xff]
    %v46 = vld [vmem:[%s1] sm:$0xff]
    %v47 = vld [vmem:[%s1 + $0x8] sm:$0xff]
    %v52 = vunpack.c.l.b16 %v42
    %v53 = vunpack.c.h.b16 %v42
    %v54 = vunpack.c.l.b16 %v43
    %v55 = vunpack.c.h.b16 %v43
    %v56 = vunpack.c.l.b16 %v44
    %v57 = vunpack.c.h.b16 %v44
    %v58 = vunpack.c.l.b16 %v45
    %v59 = vunpack.c.h.b16 %v45
    %v60 = vpack.c.b16 %v56, %v52
    %v61 = vpack.c.b16 %v57, %v53
    %v62 = vpack.c.b16 %v58, %v54
    %v63 = vpack.c.b16 %v59, %v55
    %69 = vrot.lane.b32.xlu0 %v60, 127
    %v70 = vpop.permute.xlu0 %69
    %71 = vrot.lane.b32.xlu0 %v61, 127
    %v72 = vpop.permute.xlu0 %71
    %73 = vrot.lane.b32.xlu0 %v62, 127
    %v74 = vpop.permute.xlu0 %73
    %75 = vrot.lane.b32.xlu0 %v63, 127
    %v76 = vpop.permute.xlu0 %75
    %77 = vrot.lane.b32.xlu0 0, 127
    %v78 = vpop.permute.xlu0 %77
    %vm79 = vcmask 1039360
    %v80 = vsel %vm79, %v70, %v72
    %v81 = vsel %vm79, %v72, %v74
    %v82 = vsel %vm79, %v74, %v76
    %v83 = vsel %vm79, %v76, %v78
    %88 = vrot.lane.b32.xlu0 %v60, 126
    %v89 = vpop.permute.xlu0 %88
    %90 = vrot.lane.b32.xlu0 %v61, 126
    %v91 = vpop.permute.xlu0 %90
    %92 = vrot.lane.b32.xlu0 %v62, 126
    %v93 = vpop.permute.xlu0 %92
    %94 = vrot.lane.b32.xlu0 %v63, 126
    %v95 = vpop.permute.xlu0 %94
    %96 = vrot.lane.b32.xlu0 0, 126
    %v97 = vpop.permute.xlu0 %96
    %vm98 = vcmask 1031168
    %v99 = vsel %vm98, %v89, %v91
    %v100 = vsel %vm98, %v91, %v93
    %v101 = vsel %vm98, %v93, %v95
    %v102 = vsel %vm98, %v95, %v97
    %107 = vrot.lane.b32.xlu0 %v60, 112
    %v108 = vpop.permute.xlu0 %107
    %109 = vrot.lane.b32.xlu0 %v61, 112
    %v110 = vpop.permute.xlu0 %109
    %111 = vrot.lane.b32.xlu0 %v62, 112
    %v112 = vpop.permute.xlu0 %111
    %113 = vrot.lane.b32.xlu0 %v63, 112
    %v114 = vpop.permute.xlu0 %113
    %115 = vrot.lane.b32.xlu0 0, 112
    %v116 = vpop.permute.xlu0 %115
    %vm117 = vcmask 916480
    %v118 = vsel %vm117, %v108, %v110
    %v119 = vsel %vm117, %v110, %v112
    %v120 = vsel %vm117, %v112, %v114
    %v121 = vsel %vm117, %v114, %v116
    %126 = vrot.lane.b32.xlu0 %v60, 111
    %v127 = vpop.permute.xlu0 %126
    %128 = vrot.lane.b32.xlu0 %v61, 111
    %v129 = vpop.permute.xlu0 %128
    %130 = vrot.lane.b32.xlu0 %v62, 111
    %v131 = vpop.permute.xlu0 %130
    %132 = vrot.lane.b32.xlu0 %v63, 111
    %v133 = vpop.permute.xlu0 %132
    %134 = vrot.lane.b32.xlu0 0, 111
    %v135 = vpop.permute.xlu0 %134
    %vm136 = vcmask 908288
    %v137 = vsel %vm136, %v127, %v129
    %v138 = vsel %vm136, %v129, %v131
    %v139 = vsel %vm136, %v131, %v133
    %v140 = vsel %vm136, %v133, %v135
    %145 = vrot.lane.b32.xlu0 %v60, 110
    %v146 = vpop.permute.xlu0 %145
    %147 = vrot.lane.b32.xlu0 %v61, 110
    %v148 = vpop.permute.xlu0 %147
    %149 = vrot.lane.b32.xlu0 %v62, 110
    %v150 = vpop.permute.xlu0 %149
    %151 = vrot.lane.b32.xlu0 %v63, 110
    %v152 = vpop.permute.xlu0 %151
    %153 = vrot.lane.b32.xlu0 0, 110
    %v154 = vpop.permute.xlu0 %153
    %vm155 = vcmask 900096
    %v156 = vsel %vm155, %v146, %v148
    %v157 = vsel %vm155, %v148, %v150
    %v158 = vsel %vm155, %v150, %v152
    %v159 = vsel %vm155, %v152, %v154
    %164 = vrot.lane.b32.xlu0 %v60, 96
    %v165 = vpop.permute.xlu0 %164
    %166 = vrot.lane.b32.xlu0 %v61, 96
    %v167 = vpop.permute.xlu0 %166
    %168 = vrot.lane.b32.xlu0 %v62, 96
    %v169 = vpop.permute.xlu0 %168
    %170 = vrot.lane.b32.xlu0 %v63, 96
    %v171 = vpop.permute.xlu0 %170
    %172 = vrot.lane.b32.xlu0 0, 96
    %v173 = vpop.permute.xlu0 %172
    %vm174 = vcmask 785408
    %v175 = vsel %vm174, %v165, %v167
    %v176 = vsel %vm174, %v167, %v169
    %v177 = vsel %vm174, %v169, %v171
    %v178 = vsel %vm174, %v171, %v173
    %183 = vrot.lane.b32.xlu0 %v60, 95
    %v184 = vpop.permute.xlu0 %183
    %185 = vrot.lane.b32.xlu0 %v61, 95
    %v186 = vpop.permute.xlu0 %185
    %187 = vrot.lane.b32.xlu0 %v62, 95
    %v188 = vpop.permute.xlu0 %187
    %189 = vrot.lane.b32.xlu0 %v63, 95
    %v190 = vpop.permute.xlu0 %189
    %191 = vrot.lane.b32.xlu0 0, 95
    %v192 = vpop.permute.xlu0 %191
    %vm193 = vcmask 777216
    %v194 = vsel %vm193, %v184, %v186
    %v195 = vsel %vm193, %v186, %v188
    %v196 = vsel %vm193, %v188, %v190
    %v197 = vsel %vm193, %v190, %v192
    %202 = vrot.lane.b32.xlu0 %v60, 94
    %v203 = vpop.permute.xlu0 %202
    %204 = vrot.lane.b32.xlu0 %v61, 94
    %v205 = vpop.permute.xlu0 %204
    %206 = vrot.lane.b32.xlu0 %v62, 94
    %v207 = vpop.permute.xlu0 %206
    %208 = vrot.lane.b32.xlu0 %v63, 94
    %v209 = vpop.permute.xlu0 %208
    %210 = vrot.lane.b32.xlu0 0, 94
    %v211 = vpop.permute.xlu0 %210
    %vm212 = vcmask 769024
    %v213 = vsel %vm212, %v203, %v205
    %v214 = vsel %vm212, %v205, %v207
    %v215 = vsel %vm212, %v207, %v209
    %v216 = vsel %vm212, %v209, %v211
    %v221 = vld [vmem:[%s2] sm:$0xff]
    %v222 = vld [vmem:[%s2 + $0x8] sm:$0xff]
    %224 = vset.pattern.permute.xlu0 0
    %225 = vperm.xlu0 %224, %v221
    %v226 = vpop.permute.xlu0 %225
    %229 = vset.pattern.permute.xlu0 0
    %230 = vperm.xlu0 %229, %v222
    %v231 = vpop.permute.xlu0 %230
    %v235 = vunpack.c.l.b16 %v46
    %v236 = vunpack.c.h.b16 %v46
    %v237 = vunpack.c.l.b16 %v47
    %v238 = vunpack.c.h.b16 %v47
    %v239 = vpack.c.b16 %v237, %v235
    %v240 = vpack.c.b16 %v238, %v236
    %vm242 = vcmask 130048
    %v244 = vsel %vm242, %v240, 0
    %246 = vmatprep.subr.bf16.mxu0 %v61
    %247 = vmatpush1.bf16.msra.mxu0 %v60
    %248 = vmatprep.subr.bf16.mxu0 %v81
    %249 = vmatpush1.bf16.msra.mxu0 %v80
    %250 = vmatprep.subr.bf16.mxu0 %v100
    %251 = vmatpush1.bf16.msra.mxu0 %v99
    %252 = vmatprep.subr.bf16.mxu0 %v119
    %253 = vmatpush1.bf16.msra.mxu0 %v118
    %254 = vmatprep.subr.bf16.mxu0 %v138
    %255 = vmatpush1.bf16.msra.mxu0 %v137
    %256 = vmatprep.subr.bf16.mxu0 %v157
    %257 = vmatpush1.bf16.msra.mxu0 %v156
    %258 = vmatprep.subr.bf16.mxu0 %v176
    %259 = vmatpush1.bf16.msra.mxu0 %v175
    %260 = vmatprep.subr.bf16.mxu0 %v195
    %261 = vmatpush1.bf16.msra.mxu0 %v194
    %262 = vmatprep.subr.bf16.mxu0 %v214
    %263 = vmatpush1.bf16.msra.mxu0 %v213
    %264 = vmatprep.subr.bf16.mxu0 0
    %265 = vmatpush1.bf16.msra.mxu0 0
    %266 = vmatprep.subr.bf16.mxu0 0
    %267 = vmatpush1.bf16.msra.mxu0 0
    %268 = vmatprep.subr.bf16.mxu0 0
    %269 = vmatpush1.bf16.msra.mxu0 0
    %270 = vmatprep.subr.bf16.mxu0 0
    %271 = vmatpush1.bf16.msra.mxu0 0
    %272 = vmatprep.subr.bf16.mxu0 0
    %273 = vmatpush1.bf16.msra.mxu0 0
    %274 = vmatprep.subr.bf16.mxu0 0
    %275 = vmatpush1.bf16.msra.mxu0 0
    %276 = vmatprep.subr.bf16.mxu0 0
    %277 = vmatpush1.bf16.msra.mxu0 0
    %278 = vmatprep.mubr.bf16.mxu0 %v244
    %279 = vmatmul.mubr.bf16.gmra.mrb[0].mxu0 %v239
    %v280 = vpop.f32.mrb[0].mxu0
    %v281 = vadd.f32 %v226, %v280
    %v282 = vpop.f32.mrb[0].mxu0
    %v283 = vadd.f32 %v226, %v282
    %v284 = vpop.f32.mrb[0].mxu0
    %v285 = vadd.f32 %v231, %v284
    %v286 = vpop.f32.mrb[0].mxu0
    %v287 = vadd.f32 %v231, %v286
    %288 = vdwg.mxu0
    %289 = vmatprep.subr.bf16.mxu0 %v63
    %290 = vmatpush1.bf16.msra.mxu0 %v62
    %291 = vmatprep.subr.bf16.mxu0 %v83
    %292 = vmatpush1.bf16.msra.mxu0 %v82
    %293 = vmatprep.subr.bf16.mxu0 %v102
    %294 = vmatpush1.bf16.msra.mxu0 %v101
    %295 = vmatprep.subr.bf16.mxu0 %v121
    %296 = vmatpush1.bf16.msra.mxu0 %v120
    %297 = vmatprep.subr.bf16.mxu0 %v140
    %298 = vmatpush1.bf16.msra.mxu0 %v139
    %299 = vmatprep.subr.bf16.mxu0 %v159
    %300 = vmatpush1.bf16.msra.mxu0 %v158
    %301 = vmatprep.subr.bf16.mxu0 %v178
    %302 = vmatpush1.bf16.msra.mxu0 %v177
    %303 = vmatprep.subr.bf16.mxu0 %v197
    %304 = vmatpush1.bf16.msra.mxu0 %v196
    %305 = vmatprep.subr.bf16.mxu0 %v216
    %306 = vmatpush1.bf16.msra.mxu0 %v215
    %307 = vmatprep.subr.bf16.mxu0 0
    %308 = vmatpush1.bf16.msra.mxu0 0
    %309 = vmatprep.subr.bf16.mxu0 0
    %310 = vmatpush1.bf16.msra.mxu0 0
    %311 = vmatprep.subr.bf16.mxu0 0
    %312 = vmatpush1.bf16.msra.mxu0 0
    %313 = vmatprep.subr.bf16.mxu0 0
    %314 = vmatpush1.bf16.msra.mxu0 0
    %315 = vmatprep.subr.bf16.mxu0 0
    %316 = vmatpush1.bf16.msra.mxu0 0
    %317 = vmatprep.subr.bf16.mxu0 0
    %318 = vmatpush1.bf16.msra.mxu0 0
    %319 = vmatprep.subr.bf16.mxu0 0
    %320 = vmatpush1.bf16.msra.mxu0 0
    %321 = vmatprep.mubr.bf16.mxu0 %v244
    %322 = vmatmul.mubr.bf16.gmra.mrb[0].mxu0 %v239
    %v323 = vpop.f32.mrb[0].mxu0
    %v324 = vadd.f32 %v226, %v323
    %v325 = vpop.f32.mrb[0].mxu0
    %v326 = vadd.f32 %v226, %v325
    %v327 = vpop.f32.mrb[0].mxu0
    %v328 = vadd.f32 %v231, %v327
    %v329 = vpop.f32.mrb[0].mxu0
    %v330 = vadd.f32 %v231, %v329
    %331 = vdwg.mxu0
    %v332 = vmax.f32 %v281, 0.0
    %v333 = vmax.f32 %v283, 0.0
    %v334 = vmax.f32 %v324, 0.0
    %v335 = vmax.f32 %v326, 0.0
    %v336 = vmax.f32 %v285, 0.0
    %v337 = vmax.f32 %v287, 0.0
    %v338 = vmax.f32 %v328, 0.0
    %v339 = vmax.f32 %v330, 0.0
    %v340 = vpack.c.bf16 %v336, %v332
    %v341 = vpack.c.bf16 %v337, %v333
    %v342 = vpack.c.bf16 %v338, %v334
    %v343 = vpack.c.bf16 %v339, %v335
    %v344 = vld [vmem:[#allocation2] sm:$0xff]
    %v345 = vld [vmem:[#allocation2 + $0x8] sm:$0xff]
    %350 = vrot.lane.b32.xlu0 %v340, 127
    %v351 = vpop.permute.xlu0 %350
    %352 = vrot.lane.b32.xlu0 %v341, 127
    %v353 = vpop.permute.xlu0 %352
    %354 = vrot.lane.b32.xlu0 %v342, 127
    %v355 = vpop.permute.xlu0 %354
    %356 = vrot.lane.b32.xlu0 %v343, 127
    %v357 = vpop.permute.xlu0 %356
    %v358 = vsel %vm79, %v351, %v353
    %v359 = vsel %vm79, %v353, %v355
    %v360 = vsel %vm79, %v355, %v357
    %v361 = vsel %vm79, %v357, %v78
    %366 = vrot.lane.b32.xlu0 %v340, 126
    %v367 = vpop.permute.xlu0 %366
    %368 = vrot.lane.b32.xlu0 %v341, 126
    %v369 = vpop.permute.xlu0 %368
    %370 = vrot.lane.b32.xlu0 %v342, 126
    %v371 = vpop.permute.xlu0 %370
    %372 = vrot.lane.b32.xlu0 %v343, 126
    %v373 = vpop.permute.xlu0 %372
    %v374 = vsel %vm98, %v367, %v369
    %v375 = vsel %vm98, %v369, %v371
    %v376 = vsel %vm98, %v371, %v373
    %v377 = vsel %vm98, %v373, %v97
    %382 = vrot.lane.b32.xlu0 %v340, 112
    %v383 = vpop.permute.xlu0 %382
    %384 = vrot.lane.b32.xlu0 %v341, 112
    %v385 = vpop.permute.xlu0 %384
    %386 = vrot.lane.b32.xlu0 %v342, 112
    %v387 = vpop.permute.xlu0 %386
    %388 = vrot.lane.b32.xlu0 %v343, 112
    %v389 = vpop.permute.xlu0 %388
    %v390 = vsel %vm117, %v383, %v385
    %v391 = vsel %vm117, %v385, %v387
    %v392 = vsel %vm117, %v387, %v389
    %v393 = vsel %vm117, %v389, %v116
    %398 = vrot.lane.b32.xlu0 %v340, 111
    %v399 = vpop.permute.xlu0 %398
    %400 = vrot.lane.b32.xlu0 %v341, 111
    %v401 = vpop.permute.xlu0 %400
    %402 = vrot.lane.b32.xlu0 %v342, 111
    %v403 = vpop.permute.xlu0 %402
    %404 = vrot.lane.b32.xlu0 %v343, 111
    %v405 = vpop.permute.xlu0 %404
    %v406 = vsel %vm136, %v399, %v401
    %v407 = vsel %vm136, %v401, %v403
    %v408 = vsel %vm136, %v403, %v405
    %v409 = vsel %vm136, %v405, %v135
    %414 = vrot.lane.b32.xlu0 %v340, 110
    %v415 = vpop.permute.xlu0 %414
    %416 = vrot.lane.b32.xlu0 %v341, 110
    %v417 = vpop.permute.xlu0 %416
    %418 = vrot.lane.b32.xlu0 %v342, 110
    %v419 = vpop.permute.xlu0 %418
    %420 = vrot.lane.b32.xlu0 %v343, 110
    %v421 = vpop.permute.xlu0 %420
    %v422 = vsel %vm155, %v415, %v417
    %v423 = vsel %vm155, %v417, %v419
    %v424 = vsel %vm155, %v419, %v421
    %v425 = vsel %vm155, %v421, %v154
    %430 = vrot.lane.b32.xlu0 %v340, 96
    %v431 = vpop.permute.xlu0 %430
    %432 = vrot.lane.b32.xlu0 %v341, 96
    %v433 = vpop.permute.xlu0 %432
    %434 = vrot.lane.b32.xlu0 %v342, 96
    %v435 = vpop.permute.xlu0 %434
    %436 = vrot.lane.b32.xlu0 %v343, 96
    %v437 = vpop.permute.xlu0 %436
    %v438 = vsel %vm174, %v431, %v433
    %v439 = vsel %vm174, %v433, %v435
    %v440 = vsel %vm174, %v435, %v437
    %v441 = vsel %vm174, %v437, %v173
    %446 = vrot.lane.b32.xlu0 %v340, 95
    %v447 = vpop.permute.xlu0 %446
    %448 = vrot.lane.b32.xlu0 %v341, 95
    %v449 = vpop.permute.xlu0 %448
    %450 = vrot.lane.b32.xlu0 %v342, 95
    %v451 = vpop.permute.xlu0 %450
    %452 = vrot.lane.b32.xlu0 %v343, 95
    %v453 = vpop.permute.xlu0 %452
    %v454 = vsel %vm193, %v447, %v449
    %v455 = vsel %vm193, %v449, %v451
    %v456 = vsel %vm193, %v451, %v453
    %v457 = vsel %vm193, %v453, %v192
    %462 = vrot.lane.b32.xlu0 %v340, 94
    %v463 = vpop.permute.xlu0 %462
    %464 = vrot.lane.b32.xlu0 %v341, 94
    %v465 = vpop.permute.xlu0 %464
    %466 = vrot.lane.b32.xlu0 %v342, 94
    %v467 = vpop.permute.xlu0 %466
    %468 = vrot.lane.b32.xlu0 %v343, 94
    %v469 = vpop.permute.xlu0 %468
    %v470 = vsel %vm212, %v463, %v465
    %v471 = vsel %vm212, %v465, %v467
    %v472 = vsel %vm212, %v467, %v469
    %v473 = vsel %vm212, %v469, %v211
    %v478 = vld [vmem:[%s4] sm:$0xff]
    %v479 = vld [vmem:[%s4 + $0x8] sm:$0xff]
    %481 = vset.pattern.permute.xlu0 0
    %482 = vperm.xlu0 %481, %v478
    %v483 = vpop.permute.xlu0 %482
    %486 = vset.pattern.permute.xlu0 0
    %487 = vperm.xlu0 %486, %v479
    %v488 = vpop.permute.xlu0 %487
    %v492 = vunpack.c.l.b16 %v344
    %v493 = vunpack.c.h.b16 %v344
    %v494 = vunpack.c.l.b16 %v345
    %v495 = vunpack.c.h.b16 %v345
    %v496 = vpack.c.b16 %v494, %v492
    %v497 = vpack.c.b16 %v495, %v493
    %v500 = vsel %vm242, %v497, 0
    %502 = vmatprep.subr.bf16.mxu0 %v341
    %503 = vmatpush1.bf16.msra.mxu0 %v340
    %504 = vmatprep.subr.bf16.mxu0 %v359
    %505 = vmatpush1.bf16.msra.mxu0 %v358
    %506 = vmatprep.subr.bf16.mxu0 %v375
    %507 = vmatpush1.bf16.msra.mxu0 %v374
    %508 = vmatprep.subr.bf16.mxu0 %v391
    %509 = vmatpush1.bf16.msra.mxu0 %v390
    %510 = vmatprep.subr.bf16.mxu0 %v407
    %511 = vmatpush1.bf16.msra.mxu0 %v406
    %512 = vmatprep.subr.bf16.mxu0 %v423
    %513 = vmatpush1.bf16.msra.mxu0 %v422
    %514 = vmatprep.subr.bf16.mxu0 %v439
    %515 = vmatpush1.bf16.msra.mxu0 %v438
    %516 = vmatprep.subr.bf16.mxu0 %v455
    %517 = vmatpush1.bf16.msra.mxu0 %v454
    %518 = vmatprep.subr.bf16.mxu0 %v471
    %519 = vmatpush1.bf16.msra.mxu0 %v470
    %520 = vmatprep.subr.bf16.mxu0 0
    %521 = vmatpush1.bf16.msra.mxu0 0
    %522 = vmatprep.subr.bf16.mxu0 0
    %523 = vmatpush1.bf16.msra.mxu0 0
    %524 = vmatprep.subr.bf16.mxu0 0
    %525 = vmatpush1.bf16.msra.mxu0 0
    %526 = vmatprep.subr.bf16.mxu0 0
    %527 = vmatpush1.bf16.msra.mxu0 0
    %528 = vmatprep.subr.bf16.mxu0 0
    %529 = vmatpush1.bf16.msra.mxu0 0
    %530 = vmatprep.subr.bf16.mxu0 0
    %531 = vmatpush1.bf16.msra.mxu0 0
    %532 = vmatprep.subr.bf16.mxu0 0
    %533 = vmatpush1.bf16.msra.mxu0 0
    %534 = vmatprep.mubr.bf16.mxu0 %v500
    %535 = vmatmul.mubr.bf16.gmra.mrb[0].mxu0 %v496
    %v536 = vpop.f32.mrb[0].mxu0
    %v537 = vadd.f32 %v483, %v536
    %v538 = vpop.f32.mrb[0].mxu0
    %v539 = vadd.f32 %v483, %v538
    %v540 = vpop.f32.mrb[0].mxu0
    %v541 = vadd.f32 %v488, %v540
    %v542 = vpop.f32.mrb[0].mxu0
    %v543 = vadd.f32 %v488, %v542
    %544 = vdwg.mxu0
    %545 = vmatprep.subr.bf16.mxu0 %v343
    %546 = vmatpush1.bf16.msra.mxu0 %v342
    %547 = vmatprep.subr.bf16.mxu0 %v361
    %548 = vmatpush1.bf16.msra.mxu0 %v360
    %549 = vmatprep.subr.bf16.mxu0 %v377
    %550 = vmatpush1.bf16.msra.mxu0 %v376
    %551 = vmatprep.subr.bf16.mxu0 %v393
    %552 = vmatpush1.bf16.msra.mxu0 %v392
    %553 = vmatprep.subr.bf16.mxu0 %v409
    %554 = vmatpush1.bf16.msra.mxu0 %v408
    %555 = vmatprep.subr.bf16.mxu0 %v425
    %556 = vmatpush1.bf16.msra.mxu0 %v424
    %557 = vmatprep.subr.bf16.mxu0 %v441
    %558 = vmatpush1.bf16.msra.mxu0 %v440
    %559 = vmatprep.subr.bf16.mxu0 %v457
    %560 = vmatpush1.bf16.msra.mxu0 %v456
    %561 = vmatprep.subr.bf16.mxu0 %v473
    %562 = vmatpush1.bf16.msra.mxu0 %v472
    %563 = vmatprep.subr.bf16.mxu0 0
    %564 = vmatpush1.bf16.msra.mxu0 0
    %565 = vmatprep.subr.bf16.mxu0 0
    %566 = vmatpush1.bf16.msra.mxu0 0
    %567 = vmatprep.subr.bf16.mxu0 0
    %568 = vmatpush1.bf16.msra.mxu0 0
    %569 = vmatprep.subr.bf16.mxu0 0
    %570 = vmatpush1.bf16.msra.mxu0 0
    %571 = vmatprep.subr.bf16.mxu0 0
    %572 = vmatpush1.bf16.msra.mxu0 0
    %573 = vmatprep.subr.bf16.mxu0 0
    %574 = vmatpush1.bf16.msra.mxu0 0
    %575 = vmatprep.subr.bf16.mxu0 0
    %576 = vmatpush1.bf16.msra.mxu0 0
    %577 = vmatprep.mubr.bf16.mxu0 %v500
    %578 = vmatmul.mubr.bf16.gmra.mrb[0].mxu0 %v496
    %v579 = vpop.f32.mrb[0].mxu0
    %v580 = vadd.f32 %v483, %v579
    %v581 = vpop.f32.mrb[0].mxu0
    %v582 = vadd.f32 %v483, %v581
    %v583 = vpop.f32.mrb[0].mxu0
    %v584 = vadd.f32 %v488, %v583
    %v585 = vpop.f32.mrb[0].mxu0
    %v586 = vadd.f32 %v488, %v585
    %587 = vdwg.mxu0
    %v588 = vmax.f32 %v537, 0.0
    %v589 = vmax.f32 %v539, 0.0
    %v590 = vmax.f32 %v580, 0.0
    %v591 = vmax.f32 %v582, 0.0
    %v592 = vmax.f32 %v541, 0.0
    %v593 = vmax.f32 %v543, 0.0
    %v594 = vmax.f32 %v584, 0.0
    %v595 = vmax.f32 %v586, 0.0
    %v596 = vpack.c.bf16 %v592, %v588
    %v597 = vpack.c.bf16 %v593, %v589
    %v598 = vpack.c.bf16 %v594, %v590
    %v599 = vpack.c.bf16 %v595, %v591
    %v600 = vld [vmem:[%s5] sm:$0xf]
    %v601 = vld [vmem:[%s5 + $0x4] sm:$0xf]
    %v602 = vld [vmem:[%s6] sm:$0xff]
    %v603 = vld [vmem:[%s6 + $0x8] sm:$0xff]
    %605 = vset.pattern.permute.xlu0 0
    %606 = vperm.xlu0 %605, %v602
    %v607 = vpop.permute.xlu0 %606
    %610 = vset.pattern.permute.xlu0 0
    %611 = vperm.xlu0 %610, %v603
    %v612 = vpop.permute.xlu0 %611
    %v616 = vunpack.c.l.b16 %v600
    %v617 = vunpack.c.l.b16 %v601
    %v618 = vpack.c.b16 %v617, %v616
    %v620 = vsel %vm242, %v618, 0
    %622 = vmatprep.subr.bf16.mxu0 %v597
    %623 = vmatpush1.bf16.msra.mxu0 %v596
    %624 = vmatprep.subr.bf16.mxu0 0
    %625 = vmatpush1.bf16.msra.mxu0 0
    %626 = vmatprep.subr.bf16.mxu0 0
    %627 = vmatpush1.bf16.msra.mxu0 0
    %628 = vmatprep.subr.bf16.mxu0 0
    %629 = vmatpush1.bf16.msra.mxu0 0
    %630 = vmatprep.subr.bf16.mxu0 0
    %631 = vmatpush1.bf16.msra.mxu0 0
    %632 = vmatprep.subr.bf16.mxu0 0
    %633 = vmatpush1.bf16.msra.mxu0 0
    %634 = vmatprep.subr.bf16.mxu0 0
    %635 = vmatpush1.bf16.msra.mxu0 0
    %636 = vmatprep.subr.bf16.mxu0 0
    %637 = vmatpush1.bf16.msra.mxu0 0
    %638 = vmatprep.subr.bf16.mxu0 0
    %639 = vmatpush1.bf16.msra.mxu0 0
    %640 = vmatprep.subr.bf16.mxu0 0
    %641 = vmatpush1.bf16.msra.mxu0 0
    %642 = vmatprep.subr.bf16.mxu0 0
    %643 = vmatpush1.bf16.msra.mxu0 0
    %644 = vmatprep.subr.bf16.mxu0 0
    %645 = vmatpush1.bf16.msra.mxu0 0
    %646 = vmatprep.subr.bf16.mxu0 0
    %647 = vmatpush1.bf16.msra.mxu0 0
    %648 = vmatprep.subr.bf16.mxu0 0
    %649 = vmatpush1.bf16.msra.mxu0 0
    %650 = vmatprep.subr.bf16.mxu0 0
    %651 = vmatpush1.bf16.msra.mxu0 0
    %652 = vmatprep.subr.bf16.mxu0 0
    %653 = vmatpush1.bf16.msra.mxu0 0
    %654 = vmatprep.mubr.bf16.mxu0 0
    %655 = vmatmul.mubr.bf16.gmra.mrb[0].mxu0 %v620
    %v656 = vpop.f32.mrb[0].mxu0
    %v657 = vadd.f32 %v607, %v656
    %v658 = vpop.f32.mrb[0].mxu0
    %v659 = vadd.f32 %v607, %v658
    %v660 = vpop.f32.mrb[0].mxu0
    %v661 = vadd.f32 %v612, %v660
    %v662 = vpop.f32.mrb[0].mxu0
    %v663 = vadd.f32 %v612, %v662
    %664 = vdwg.mxu0
    %665 = vmatprep.subr.bf16.mxu0 %v599
    %666 = vmatpush1.bf16.msra.mxu0 %v598
    %667 = vmatprep.subr.bf16.mxu0 0
    %668 = vmatpush1.bf16.msra.mxu0 0
    %669 = vmatprep.subr.bf16.mxu0 0
    %670 = vmatpush1.bf16.msra.mxu0 0
    %671 = vmatprep.subr.bf16.mxu0 0
    %672 = vmatpush1.bf16.msra.mxu0 0
    %673 = vmatprep.subr.bf16.mxu0 0
    %674 = vmatpush1.bf16.msra.mxu0 0
    %675 = vmatprep.subr.bf16.mxu0 0
    %676 = vmatpush1.bf16.msra.mxu0 0
    %677 = vmatprep.subr.bf16.mxu0 0
    %678 = vmatpush1.bf16.msra.mxu0 0
    %679 = vmatprep.subr.bf16.mxu0 0
    %680 = vmatpush1.bf16.msra.mxu0 0
    %681 = vmatprep.subr.bf16.mxu0 0
    %682 = vmatpush1.bf16.msra.mxu0 0
    %683 = vmatprep.subr.bf16.mxu0 0
    %684 = vmatpush1.bf16.msra.mxu0 0
    %685 = vmatprep.subr.bf16.mxu0 0
    %686 = vmatpush1.bf16.msra.mxu0 0
    %687 = vmatprep.subr.bf16.mxu0 0
    %688 = vmatpush1.bf16.msra.mxu0 0
    %689 = vmatprep.subr.bf16.mxu0 0
    %690 = vmatpush1.bf16.msra.mxu0 0
    %691 = vmatprep.subr.bf16.mxu0 0
    %692 = vmatpush1.bf16.msra.mxu0 0
    %693 = vmatprep.subr.bf16.mxu0 0
    %694 = vmatpush1.bf16.msra.mxu0 0
    %695 = vmatprep.subr.bf16.mxu0 0
    %696 = vmatpush1.bf16.msra.mxu0 0
    %697 = vmatprep.mubr.bf16.mxu0 0
    %698 = vmatmul.mubr.bf16.gmra.mrb[0].mxu0 %v620
    %v699 = vpop.f32.mrb[0].mxu0
    %v700 = vadd.f32 %v607, %v699
    %v701 = vpop.f32.mrb[0].mxu0
    %v702 = vadd.f32 %v607, %v701
    %v703 = vpop.f32.mrb[0].mxu0
    %v704 = vadd.f32 %v612, %v703
    %v705 = vpop.f32.mrb[0].mxu0
    %v706 = vadd.f32 %v612, %v705
    %707 = vdwg.mxu0
    %v708 = vmax.f32 %v657, 0.0
    %v709 = vmax.f32 %v659, 0.0
    %v710 = vmax.f32 %v700, 0.0
    %v711 = vmax.f32 %v702, 0.0
    %v712 = vmax.f32 %v661, 0.0
    %v713 = vmax.f32 %v663, 0.0
    %v714 = vmax.f32 %v704, 0.0
    %v715 = vmax.f32 %v706, 0.0
    %716 = vst [vmem:[#allocation5] sm:$0xff] %v708
    %717 = vst [vmem:[#allocation5 + $0x8] sm:$0xff] %v709
    %718 = vst [vmem:[#allocation5 + $0x10] sm:$0xff] %v710
    %719 = vst [vmem:[#allocation5 + $0x18] sm:$0xff] %v711
    %720 = vst [vmem:[#allocation5 + $0x20] sm:$0xff] %v712
    %721 = vst [vmem:[#allocation5 + $0x28] sm:$0xff] %v713
    %722 = vst [vmem:[#allocation5 + $0x30] sm:$0xff] %v714
    %723 = vst [vmem:[#allocation5 + $0x38] sm:$0xff] %v715
    // Predicated region
    $region34: #{tpu_custom_call.1} parent=1 // pred_check
      _
    $region35: #{tpu_custom_call.1} parent=1 // pred_check_branch
      %725 = sbr.rel (0) target = $region37
    $region36: #{tpu_custom_call.1} parent=1 // pred_region
      %s727 = ssub.s32 1024, 1024
      %728 = vsyncadd [#allocation4], %s727
      %s729 = sshll.u32 [#allocation5], 4
      %s730 = int_to_ptr.vmem [resolvable:$true] %s729
      %735 = dma.vmem_to_hbm [thread:$0]  %s730, 1024, %s7, [#allocation4], 512, 512, 32
    $region37: #{tpu_custom_call.1} parent=1 // pred_fallthru
      _
    // Predicated region
    $region38: #{tpu_custom_call.1} parent=1 // pred_check
      _
    $region39: #{tpu_custom_call.1} parent=1 // pred_check_branch
      %737 = sbr.rel (0) target = $region41
    $region40: #{tpu_custom_call.1} parent=1 // pred_region
      %738 = dma.done [#allocation4], 1024
    $region41: #{tpu_custom_call.1} parent=1 // pred_fallthru
      _
    %739 = vsyncpa [#allocation3], 1
    %740 = vsyncpa [#allocation4], 1

</llo_original>
